<compile_context>
chip_gen: v7x
topology: tpu7x:2x2x1
jax: 0.10.0
libtpu: 0.0.40
codegen_flags: <defaults>
</compile_context>

<pallas_src>
import functools

import jax
import jax.numpy as jnp
from jax import lax
from jax.experimental import pallas as pl
from jax.experimental.pallas import tpu as pltpu

_LANES = 128
_SUBLANES = 8
# (4096, 128) f32 block = 2 MiB; 2 inputs x 2 pipeline buffers = 8 MiB VMEM.
_MAX_BLOCK_ROWS = 4096


def _num_shards():
    """Use a 2-way shard axis only where there are 2 TensorCores per chip (v7x)."""
    try:
        kind = jax.devices()[0].device_kind.lower()
    except Exception:
        return 1
    return 2 if ("v7" in kind or "tpu7" in kind) else 1


def _huber_partial_kernel(x_ref, c_ref, out_ref, acc_ref, *,
                          n_valid, block_rows, blocks_per_shard):
    s = pl.program_id(0)      # shard (parallel axis; size 1 on v5e/v6e)
    i = pl.program_id(1)      # streaming block within shard (arbitrary axis)

    @pl.when(i == 0)
    def _():
        acc_ref[...] = jnp.zeros_like(acc_ref)

    # Branchless Huber (delta = 1.0): q = min(|d|, 1); q * (|d| - q/2)
    d = x_ref[...].astype(jnp.float32) - c_ref[...].astype(jnp.float32)
    ad = jnp.abs(d)
    q = jnp.minimum(ad, 1.0)
    elem = q * (ad - 0.5 * q)

    block_elems = block_rows * _LANES
    block_idx = s * blocks_per_shard + i        # UNclamped global block index
    base = block_idx * block_elems
    # Only boundary / clamped-duplicate blocks need the per-element mask; interior
    # blocks skip roughly half the per-element VPU work (matters on v7x).
    needs_mask = base + block_elems > n_valid

    @pl.when(jnp.logical_not(needs_mask))
    def _():
        acc_ref[...] += elem.reshape(-1, _SUBLANES, _LANES).sum(axis=0)

    @pl.when(needs_mask)
    def _():
        # Base-free local index vs per-block scalar threshold. Covers the
        # zero-pad tail, garbage in the partial final block's overhang, and
        # fully-masked clamped duplicate blocks (threshold <= 0).
        # TODO(synk): threshold math is int32; tensors with > 2^31 elements would
        # need 64-bit-safe scalar handling.
        row_ids = lax.broadcasted_iota(jnp.int32, (block_rows, _LANES), 0)
        lane_ids = lax.broadcasted_iota(jnp.int32, (block_rows, _LANES), 1)
        local_idx = row_ids * _LANES + lane_ids
        masked = jnp.where(local_idx < (n_valid - base), elem, 0.0)
        acc_ref[...] += masked.reshape(-1, _SUBLANES, _LANES).sum(axis=0)

    @pl.when(i == blocks_per_shard - 1)
    def _():
        out_ref[0, 0] = jnp.sum(acc_ref[...])


def content_loss_forward(x, content, *, max_block_rows=_MAX_BLOCK_ROWS):
    """Replicates ContentLoss.forward: returns (input, huber_loss(input, content))."""
    assert x.shape == content.shape, "input and content must have the same shape"
    n = x.size

    xf = x.reshape(-1)
    cf = content.reshape(-1)

    # Pad only to a lane multiple (<= 127 elements); lane-aligned sizes (the common
    # case for NN feature maps) take the zero-copy reshape-only path.
    pad = (-n) % _LANES
    rows = (n + pad) // _LANES

    if rows <= max_block_rows:
        # Small tensor: single full-extent block. Round rows to a sublane multiple
        # so the in-kernel (rows,128)->(rows/8,8,128) reshape-sum is exact.
        rows_aligned = ((rows + _SUBLANES - 1) // _SUBLANES) * _SUBLANES
        pad += (rows_aligned - rows) * _LANES
        rows = rows_aligned
        block_rows = rows
    else:
        block_rows = max_block_rows   # multiple of 8 (and 32: safe for packed dtypes)

    if pad:
        # TODO(synk): for huge lane-misaligned tensors this full-array pad copy could
        # be avoided by folding the <128-element tail into a tiny pure-JAX sum.
        xf = jnp.pad(xf, (0, pad))
        cf = jnp.pad(cf, (0, pad))

    x2 = xf.reshape(rows, _LANES)
    c2 = cf.reshape(rows, _LANES)

    total_blocks = pl.cdiv(rows, block_rows)
    shards = _num_shards()
    blocks_per_shard = pl.cdiv(total_blocks, shards)

    if shards == 1:
        in_map = lambda s, i: (i, 0)
    else:
        # Clamp so the DMA never targets a block past the array; clamped duplicate
        # blocks are fully masked to zero inside the kernel.
        in_map = lambda s, i: (jnp.minimum(s * blocks_per_shard + i,
                                           total_blocks - 1), 0)

    kernel = functools.partial(
        _huber_partial_kernel,
        n_valid=n,
        block_rows=block_rows,
        blocks_per_shard=blocks_per_shard,
    )

    partials = pl.pallas_call(
        kernel,
        out_shape=jax.ShapeDtypeStruct((shards, 1), jnp.float32),
        grid_spec=pltpu.PrefetchScalarGridSpec(
            num_scalar_prefetch=0,
            grid=(shards, blocks_per_shard),
            in_specs=[
                pl.BlockSpec((block_rows, _LANES), in_map),
                pl.BlockSpec((block_rows, _LANES), in_map),
            ],
            out_specs=pl.BlockSpec((1, 1), lambda s, i: (s, 0),
                                   memory_space=pltpu.SMEM),
            scratch_shapes=[pltpu.VMEM((_SUBLANES, _LANES), jnp.float32)],
        ),
        compiler_params=pltpu.CompilerParams(
            dimension_semantics=("parallel", "arbitrary")),
    )(x2, c2)

    loss = jnp.sum(partials) / jnp.float32(n)
    # forward() returns the input unchanged; loss is the side value (self.loss).
    return x, loss


def _huber_ref(x, c):
    d = x.astype(jnp.float32) - c.astype(jnp.float32)
    ad = jnp.abs(d)
    return jnp.mean(jnp.where(ad < 1.0, 0.5 * d * d, ad - 0.5))


if __name__ == "__main__":
    key = jax.random.PRNGKey(0)
    k_in, k_content = jax.random.split(key)

    # Main case: small NCHW feature map (lane-aligned element count).
    shape = (2, 4, 16, 16)
    x = jax.random.normal(k_in, shape, dtype=jnp.float32)
    # "content" target: deterministic synthetic tensor (stand-in for content.detach()).
    content = jax.random.normal(k_content, shape, dtype=jnp.float32)

    out, loss = jax.jit(content_loss_forward)(x, content)
    out = jax.block_until_ready(out)
    loss = jax.block_until_ready(loss)

    ref_loss = _huber_ref(x, content)
    assert out.shape == x.shape and out.dtype == x.dtype
    assert jnp.allclose(out, x), "forward must return input unchanged"
    assert jnp.allclose(loss, ref_loss, rtol=1e-6, atol=1e-6), (loss, ref_loss)

    # Misaligned size -> pad + masked-boundary-block path.
    x3 = jax.random.normal(k_in, (3, 5, 7, 11), dtype=jnp.float32)      # 1155 elems
    c3 = jax.random.normal(k_content, (3, 5, 7, 11), dtype=jnp.float32)
    _, loss3 = jax.jit(content_loss_forward)(x3, c3)
    assert jnp.allclose(jax.block_until_ready(loss3), _huber_ref(x3, c3),
                        rtol=1e-6, atol=1e-6)

    # Multi-block streaming path (small block size to force >1 grid step; exercises
    # the unmasked interior-block branch and accumulator init/finalize).
    fwd_small_blocks = functools.partial(content_loss_forward, max_block_rows=8)
    x4 = jax.random.normal(k_in, (4, 8, 8, 8), dtype=jnp.float32)
    c4 = jax.random.normal(k_content, (4, 8, 8, 8), dtype=jnp.float32)
    _, loss4 = jax.jit(fwd_small_blocks)(x4, c4)
    assert jnp.allclose(jax.block_until_ready(loss4), _huber_ref(x4, c4),
                        rtol=1e-6, atol=1e-6)

    # bf16 inputs (packed-dtype load path, f32 accumulation).
    xb = x.astype(jnp.bfloat16)
    cb = content.astype(jnp.bfloat16)
    _, loss_b = jax.jit(content_loss_forward)(xb, cb)
    assert jnp.allclose(jax.block_until_ready(loss_b), _huber_ref(xb, cb),
                        rtol=1e-5, atol=1e-5)

    print("KERNEL_OK")
</pallas_src>

<mosaic_0001>
module attributes {stable_mosaic.version = 11 : i64} {
  func.func @_huber_partial_kernel(%arg0: i32, %arg1: i32, %arg2: memref<16x128xf32, #tpu.memory_space<vmem>>, %arg3: memref<16x128xf32, #tpu.memory_space<vmem>>, %arg4: memref<1x1xf32, #tpu.memory_space<smem>>, %arg5: memref<8x128xf32, #tpu.memory_space<vmem>>) attributes {dimension_semantics = [#tpu.dimension_semantics<parallel>, #tpu.dimension_semantics<arbitrary>], iteration_bounds = array<i64: 1, 1>, scalar_prefetch = 0 : i64, scratch_operands = 1 : i64, tpu.core_type = #tpu.core_type<tc>, window_params = [{transform_indices = @transform_0, window_bounds = array<i64: 16, 128>}, {transform_indices = @transform_1, window_bounds = array<i64: 16, 128>}, {transform_indices = @transform_2, window_bounds = array<i64: 1, 1>}]} {
    %c0_i32 = arith.constant 0 : i32
    %0 = arith.cmpi eq, %arg1, %c0_i32 : i32
    %1 = arith.extui %0 : i1 to i32
    %c0_i32_0 = arith.constant 0 : i32
    %2 = arith.cmpi ne, %1, %c0_i32_0 : i32
    scf.if %2 {
      %cst_11 = arith.constant 0.000000e+00 : f32
      %26 = vector.broadcast %cst_11 : f32 to vector<8x128xf32>
      %c0_12 = arith.constant 0 : index
      %c0_13 = arith.constant 0 : index
      %27 = vector.load %arg5[%c0_12, %c0_13] : memref<8x128xf32, #tpu.memory_space<vmem>>, vector<8x128xf32>
      tpu.vector_store %arg5[%c0_12, %c0_13], %26 {strides = array<i32>} : memref<8x128xf32, #tpu.memory_space<vmem>>, vector<8x128xf32>,
    } else {
    }
    %c0 = arith.constant 0 : index
    %c0_1 = arith.constant 0 : index
    %3 = vector.load %arg2[%c0, %c0_1] : memref<16x128xf32, #tpu.memory_space<vmem>>, vector<16x128xf32>
    %c0_2 = arith.constant 0 : index
    %c0_3 = arith.constant 0 : index
    %4 = vector.load %arg3[%c0_2, %c0_3] : memref<16x128xf32, #tpu.memory_space<vmem>>, vector<16x128xf32>
    %5 = arith.subf %3, %4 : vector<16x128xf32>
    %6 = math.absf %5 : vector<16x128xf32>
    %cst = arith.constant 1.000000e+00 : f32
    %7 = vector.broadcast %cst : f32 to vector<16x128xf32>
    %8 = arith.minimumf %6, %7 : vector<16x128xf32>
    %cst_4 = arith.constant 5.000000e-01 : f32
    %9 = vector.broadcast %cst_4 : f32 to vector<16x128xf32>
    %10 = arith.mulf %9, %8 : vector<16x128xf32>
    %11 = arith.subf %6, %10 : vector<16x128xf32>
    %12 = arith.mulf %8, %11 : vector<16x128xf32>
    %c1_i32 = arith.constant 1 : i32
    %13 = arith.muli %arg0, %c1_i32 : i32
    %14 = arith.addi %13, %arg1 : i32
    %c2048_i32 = arith.constant 2048 : i32
    %15 = arith.muli %14, %c2048_i32 : i32
    %c2048_i32_5 = arith.constant 2048 : i32
    %16 = arith.addi %15, %c2048_i32_5 : i32
    %c2048_i32_6 = arith.constant 2048 : i32
    %17 = arith.cmpi sgt, %16, %c2048_i32_6 : i32
    %true = arith.constant true
    %18 = arith.xori %17, %true : i1
    %19 = arith.extui %18 : i1 to i32
    %c0_i32_7 = arith.constant 0 : i32
    %20 = arith.cmpi ne, %19, %c0_i32_7 : i32
    scf.if %20 {
      %c0_11 = arith.constant 0 : index
      %c0_12 = arith.constant 0 : index
      %26 = vector.load %arg5[%c0_11, %c0_12] : memref<8x128xf32, #tpu.memory_space<vmem>>, vector<8x128xf32>
      %27 = vector.shape_cast %12 : vector<16x128xf32> to vector<2x8x128xf32>
      %cst_13 = arith.constant dense<0.000000e+00> : vector<8x128xf32>
      %28 = vector.multi_reduction <add>, %27, %cst_13 [0] : vector<2x8x128xf32> to vector<8x128xf32>
      %29 = arith.addf %26, %28 : vector<8x128xf32>
      %c0_14 = arith.constant 0 : index
      %c0_15 = arith.constant 0 : index
      %30 = vector.load %arg5[%c0_14, %c0_15] : memref<8x128xf32, #tpu.memory_space<vmem>>, vector<8x128xf32>
      tpu.vector_store %arg5[%c0_14, %c0_15], %29 {strides = array<i32>} : memref<8x128xf32, #tpu.memory_space<vmem>>, vector<8x128xf32>,
    } else {
    }
    %21 = arith.extui %17 : i1 to i32
    %c0_i32_8 = arith.constant 0 : i32
    %22 = arith.cmpi ne, %21, %c0_i32_8 : i32
    scf.if %22 {
      %26 = tpu.iota {dimensions = array<i32: 0>} : vector<16x128xi32>
      %27 = tpu.iota {dimensions = array<i32: 1>} : vector<16x128xi32>
      %c128_i32 = arith.constant 128 : i32
      %28 = vector.broadcast %c128_i32 : i32 to vector<16x128xi32>
      %29 = arith.muli %26, %28 : vector<16x128xi32>
      %30 = arith.addi %29, %27 : vector<16x128xi32>
      %c2048_i32_11 = arith.constant 2048 : i32
      %31 = arith.subi %c2048_i32_11, %15 : i32
      %32 = vector.broadcast %31 : i32 to vector<16x128xi32>
      %33 = arith.cmpi slt, %30, %32 : vector<16x128xi32>
      %cst_12 = arith.constant 0.000000e+00 : f32
      %34 = vector.broadcast %cst_12 : f32 to vector<16x128xf32>
      %35 = arith.select %33, %12, %34 : vector<16x128xi1>, vector<16x128xf32>
      %c0_13 = arith.constant 0 : index
      %c0_14 = arith.constant 0 : index
      %36 = vector.load %arg5[%c0_13, %c0_14] : memref<8x128xf32, #tpu.memory_space<vmem>>, vector<8x128xf32>
      %37 = vector.shape_cast %35 : vector<16x128xf32> to vector<2x8x128xf32>
      %cst_15 = arith.constant dense<0.000000e+00> : vector<8x128xf32>
      %38 = vector.multi_reduction <add>, %37, %cst_15 [0] : vector<2x8x128xf32> to vector<8x128xf32>
      %39 = arith.addf %36, %38 : vector<8x128xf32>
      %c0_16 = arith.constant 0 : index
      %c0_17 = arith.constant 0 : index
      %40 = vector.load %arg5[%c0_16, %c0_17] : memref<8x128xf32, #tpu.memory_space<vmem>>, vector<8x128xf32>
      tpu.vector_store %arg5[%c0_16, %c0_17], %39 {strides = array<i32>} : memref<8x128xf32, #tpu.memory_space<vmem>>, vector<8x128xf32>,
    } else {
    }
    %c0_i32_9 = arith.constant 0 : i32
    %23 = arith.cmpi eq, %arg1, %c0_i32_9 : i32
    %24 = arith.extui %23 : i1 to i32
    %c0_i32_10 = arith.constant 0 : i32
    %25 = arith.cmpi ne, %24, %c0_i32_10 : i32
    scf.if %25 {
      %c0_11 = arith.constant 0 : index
      %c0_12 = arith.constant 0 : index
      %26 = vector.load %arg5[%c0_11, %c0_12] : memref<8x128xf32, #tpu.memory_space<vmem>>, vector<8x128xf32>
      %27 = vector.shape_cast %26 : vector<8x128xf32> to vector<1x8x128xf32>
      %cst_13 = arith.constant dense<0.000000e+00> : vector<1xf32>
      %28 = vector.multi_reduction <add>, %27, %cst_13 [1, 2] : vector<1x8x128xf32> to vector<1xf32>
      %29 = vector.shape_cast %28 : vector<1xf32> to vector<1x1x1xf32>
      %30 = vector.extract %29[0, 0, 0] : f32 from vector<1x1x1xf32>
      %c0_14 = arith.constant 0 : index
      %c0_15 = arith.constant 0 : index
      %31 = memref.load %arg4[%c0_14, %c0_15] : memref<1x1xf32, #tpu.memory_space<smem>>
      memref.store %30, %arg4[%c0_14, %c0_15] : memref<1x1xf32, #tpu.memory_space<smem>>
    } else {
    }
    return
  }
  func.func @transform_0(%arg0: i32, %arg1: i32) -> (i32, i32) {
    %c0_i32 = arith.constant 0 : i32
    %c0_i32_0 = arith.constant 0 : i32
    return %arg1, %c0_i32 : i32, i32
  }
  func.func @transform_1(%arg0: i32, %arg1: i32) -> (i32, i32) {
    %c0_i32 = arith.constant 0 : i32
    %c0_i32_0 = arith.constant 0 : i32
    return %arg1, %c0_i32 : i32, i32
  }
  func.func @transform_2(%arg0: i32, %arg1: i32) -> (i32, i32) {
    %c0_i32 = arith.constant 0 : i32
    %c0_i32_0 = arith.constant 0 : i32
    return %arg0, %c0_i32 : i32, i32
  }
}

</mosaic_0001>

<llo_original>
// kernel: content_loss_forward.1
$region0: #{content_loss_forward.1}
  #allocation0 [shape = 'u32[]', space=smem, size = 0x4, offset = 0x4, fixed_abs, tag = 'smem constant byte address 0x4 - core index']
  #allocation1 [shape = 'u32[144,128]{1,0:T(1,128)}', space=vmem, size = 0x12000, scoped, tag = 'internal scratch']
  #allocation2 [shape = 'f32[8,128]{1,0:T(8,128)}', space=vmem, size = 0x1000, scoped, tag = 'scratch operand']
  %s0 = inlined_call_operand.vmem [shape: f32[16,128], index: 0, kind: input, shape index: {}]
  %s1 = inlined_call_operand.vmem [shape: f32[16,128], index: 1, kind: input, shape index: {}]
  %s2 = inlined_call_operand.hbm [shape: f32[1,1], index: 2, kind: output, shape index: {}]
  %s3 = sld [smem:[#allocation0]]
  $region34: #{content_loss_forward.1} parent=0
    _
  %s5 = ssub.s32 1, %s3
  %s6 = scalar_select 0, %s5, %s3
  $region1: #{content_loss_forward.1} parent=0
    #allocation3 [shape = 'u8[512]{0}', space=smem, size = 0x200, scoped, tag = 'output window, operand 0, single buffered']
    #allocation4 [shape = 's32[1]{0}', space=sflag, size = 0x4, scoped, tag = 'scoped memory for content_loss_forward.1']
    %7 = vsyncpa [#allocation4], 0
    // Predicated region
    $region2: #{content_loss_forward.1} parent=1 // pred_check
      _
    $region3: #{content_loss_forward.1} parent=1 // pred_check_branch
      %9 = sbr.rel (0) target = $region5
    $region4: #{content_loss_forward.1} parent=1 // pred_region
      _
    $region5: #{content_loss_forward.1} parent=1 // pred_fallthru
      _
    // Predicated region
    $region6: #{content_loss_forward.1} parent=1 // pred_check
      _
    $region7: #{content_loss_forward.1} parent=1 // pred_check_branch
      %11 = sbr.rel (0) target = $region9
    $region8: #{content_loss_forward.1} parent=1 // pred_region
      _
    $region9: #{content_loss_forward.1} parent=1 // pred_fallthru
      _
    %p12 = scmp.eq.s32.totalorder 0, 0
    // Predicated region
    $region10: #{content_loss_forward.1} parent=1 // pred_check
      %p13 = pneg %p12
    $region11: #{content_loss_forward.1} parent=1 // pred_check_branch
      %15 = sbr.rel (%p13) target = $region13
    $region12: #{content_loss_forward.1} parent=1 // pred_region
      %16 = vst [vmem:[#allocation2] sm:$0xff] 0.0
    $region13: #{content_loss_forward.1} parent=1 // pred_fallthru
      _
    %v17 = vld [vmem:[%s0] sm:$0xff]
    %v18 = vld [vmem:[%s0 + $0x8] sm:$0xff]
    %v19 = vld [vmem:[%s1] sm:$0xff]
    %v20 = vld [vmem:[%s1 + $0x8] sm:$0xff]
    %v21 = vsub.f32 %v17, %v19
    %v22 = vsub.f32 %v18, %v20
    %v23 = vand.u32 2147483647, %v21
    %v24 = vand.u32 2147483647, %v22
    %v25 = vmin.f32 %v23, 1.0
    %v26 = vmin.f32 %v24, 1.0
    %v27 = vmul.f32 %v25, 0.5
    %v28 = vmul.f32 %v26, 0.5
    %v29 = vsub.f32 %v23, %v27
    %v30 = vsub.f32 %v24, %v28
    %v31 = vmul.f32 %v25, %v29
    %v32 = vmul.f32 %v26, %v30
    %s33 = sadd.s32 0, 0
    %s34 = smul.u32 %s33, 2048
    %s35 = sadd.s32 %s34, 2048
    %p36 = scmp.gt.s32.totalorder %s35, 2048
    %p37 = scmp.le.s32.totalorder %s35, 2048
    // Predicated region
    $region14: #{content_loss_forward.1} parent=1 // pred_check
      %p38 = pneg %p37
    $region15: #{content_loss_forward.1} parent=1 // pred_check_branch
      %40 = sbr.rel (%p38) target = $region17
    $region16: #{content_loss_forward.1} parent=1 // pred_region
      %v41 = vld [vmem:[#allocation2] sm:$0xff]
      %v42 = vadd.f32 %v31, %v32
      %v43 = vadd.f32 %v41, %v42
      %44 = vst [vmem:[#allocation2] sm:$0xff] %v43
    $region17: #{content_loss_forward.1} parent=1 // pred_fallthru
      _
    // Predicated region
    $region18: #{content_loss_forward.1} parent=1 // pred_check
      %p45 = pneg %p36
    $region19: #{content_loss_forward.1} parent=1 // pred_check_branch
      %47 = sbr.rel (%p45) target = $region21
    $region20: #{content_loss_forward.1} parent=1 // pred_region
      %v48 = vlaneseq
      %v49 = vshrl.u32 %v48, 7
      %v50 = vadd.s32 %v49, 8
      %v51 = vlaneseq
      %v52 = vand.u32 %v51, 127
      %v53 = vmul.u32 %v49, 128
      %v54 = vmul.u32 %v50, 128
      %v55 = vadd.s32 %v53, %v52
      %v56 = vadd.s32 %v54, %v52
      %s57 = ssub.s32 2048, %s34
      %v58 = vstv %s57
      %vm59 = vcmp.lt.s32.totalorder %v55, %v58
      %vm60 = vcmp.lt.s32.totalorder %v56, %v58
      %v61 = vsel %vm59, %v31, 0.0
      %v62 = vsel %vm60, %v32, 0.0
      %v63 = vld [vmem:[#allocation2] sm:$0xff]
      %v64 = vadd.f32 %v61, %v62
      %v65 = vadd.f32 %v63, %v64
      %66 = vst [vmem:[#allocation2] sm:$0xff] %v65
    $region21: #{content_loss_forward.1} parent=1 // pred_fallthru
      _
    // Predicated region
    $region22: #{content_loss_forward.1} parent=1 // pred_check
      %p67 = pneg %p12
    $region23: #{content_loss_forward.1} parent=1 // pred_check_branch
      %69 = sbr.rel (%p67) target = $region25
    $region24: #{content_loss_forward.1} parent=1 // pred_region
      %v70 = vld [vmem:[#allocation2] sm:$0xff]
      %71 = vadd.xlane.f32.xlu0 %v70
      %v72 = vpop.xlane.xlu0 %71
      %v73 = vrot.slane %v72, 4
      %v74 = vadd.f32 %v72, %v73
      %v75 = vrot.slane %v74, 2
      %v76 = vadd.f32 %v74, %v75
      %v77 = vrot.slane %v76, 1
      %v78 = vadd.f32 %v76, %v77
      %s79 = vtos %v78
      %s80 = scalar_lea.smem [#allocation3], 0
      %81 = sst [smem:[%s80]] %s79
    $region25: #{content_loss_forward.1} parent=1 // pred_fallthru
      _
    // Predicated region
    $region26: #{content_loss_forward.1} parent=1 // pred_check
      _
    $region27: #{content_loss_forward.1} parent=1 // pred_check_branch
      %83 = sbr.rel (0) target = $region29
    $region28: #{content_loss_forward.1} parent=1 // pred_region
      %s85 = ssub.s32 16, 16
      %86 = vsyncadd [#allocation4], %s85
      %89 = dma.smem_to_hbm [#allocation3], 16, %s2, [#allocation4]
    $region29: #{content_loss_forward.1} parent=1 // pred_fallthru
      _
    // Predicated region
    $region30: #{content_loss_forward.1} parent=1 // pred_check
      _
    $region31: #{content_loss_forward.1} parent=1 // pred_check_branch
      %91 = sbr.rel (0) target = $region33
    $region32: #{content_loss_forward.1} parent=1 // pred_region
      %92 = dma.done [#allocation4], 16
    $region33: #{content_loss_forward.1} parent=1 // pred_fallthru
      _
    %93 = sfence
    %94 = vsyncpa [#allocation4], 1

</llo_original>
